<compile_context>
chip_gen: v6e
topology: v6e:2x2x1
jax: 0.10.0
libtpu: 0.0.40
codegen_flags: <defaults>
</compile_context>

<pallas_src>
import jax
import jax.numpy as jnp
from jax import lax
from jax.experimental import pallas as pl
from jax.experimental.pallas import tpu as pltpu


# ----------------------------------------------------------------------------
# Fused backbone forward: returns (fc_last, fc3, fc2, fc1) like PyTorch.
# ----------------------------------------------------------------------------
def seismicnet_forward(x_nchw, params):
    conv_w, conv_b, fc_params = params                  # conv_w: [9*C, oc]
    (w1, b1), (w2, b2), (w3, b3), (w4, b4) = fc_params

    bsz = x_nchw.shape[0]
    oc = conv_w.shape[1]

    # NCHW -> NHWC, cast to bf16 BEFORE patch extraction/regroup (halves glue bytes).
    x = jnp.transpose(x_nchw, (0, 2, 3, 1)).astype(jnp.bfloat16)
    _, h, w, _ = x.shape
    ph, pw = h // 2, w // 2

    # 3x3 'SAME' patches as one fused XLA gather.                   [bsz, h, w, kp]
    patches = lax.conv_general_dilated_patches(
        x, filter_shape=(3, 3), window_strides=(1, 1), padding='SAME',
        dimension_numbers=('NHWC', 'HWIO', 'NHWC'))
    kp = patches.shape[-1]

    gp = 128 // oc               # pool positions packed per kernel row  (16)
    rpg = gp // pw               # pooled-grid rows per row-group        (2)
    ng = (ph * pw) // gp         # row-groups per image; feat dim = ng*128 (4)
    assert gp * oc == 128 and rpg * pw == gp and ng * gp == ph * pw
    assert w1.shape[0] == ng * 128 and w2.shape[0] == 128
    assert w3.shape[1] <= 128 and w4.shape[0] <= 128 and w4.shape[1] <= 128

    # Regroup patches so one matmul row carries 16 pool positions of one image,
    # grouped by the 2x2 pool offset q=(dy,dx):
    #   row = q*(ng*bsz) + rg*bsz + b ,  lane block j*kp.. = position j in group.
    p = patches.reshape(bsz, ng, rpg, 2, pw, 2, kp)      # [b, rg, pr2, dy, pc, dx, k]
    p = p.transpose(3, 5, 1, 0, 2, 4, 6)                 # [dy, dx, rg, b, pr2, pc, k]
    p = p.reshape(4 * ng * bsz, gp * kp)                 # [4*ng*bsz, 16*kp]  bf16

    # Block-diagonal conv weight: output lane j*oc+c = conv channel c of position j,
    # i.e. the conv result lands directly in flattened-feature order per row-group.
    conv_w_bf = conv_w.astype(jnp.bfloat16)
    eye = jnp.eye(gp, dtype=jnp.bfloat16)
    w_blk = jnp.einsum('jJ,kc->jkJc', eye, conv_w_bf).reshape(gp * kp, gp * oc)
    b_conv = jnp.tile(conv_b, (1, gp))                   # [1, 128] f32

    # fc3 / fc_last zero-padded to 128 output columns so every matmul and store is
    # a 128-lane multiple.  Exact because padded weight AND bias entries are zero
    # (relu(0) = 0 feeds zero rows of the padded w4).
    pad_c = lambda a: jnp.pad(a, ((0, 0), (0, 128 - a.shape[1])))
    w3p, b3p = pad_c(w3), pad_c(b3)
    w4p = jnp.pad(w4, ((0, 128 - w4.shape[0]), (0, 128 - w4.shape[1])))
    b4p = pad_c(b4)
    bf = lambda a: a.astype(jnp.bfloat16)

    m = ng * bsz                 # rows per pool offset in the conv matmul

    def fused_kernel(p_ref, wblk_ref, bc_ref, w1_ref, b1_ref, w2_ref, b2_ref,
                     w3_ref, b3_ref, w4_ref, b4_ref, o_ref):
        # Conv for all 4 pool offsets as ONE matmul (offsets folded into M).
        y = jnp.dot(p_ref[...], wblk_ref[...],
                    preferred_element_type=jnp.float32)              # [4*m, 128]
        # 2x2 maxpool = elementwise max of the 4 offset blocks; bias + ReLU hoisted
        # after the max (exact, both monotonic).
        ym = jnp.maximum(jnp.maximum(y[0:m], y[m:2 * m]),
                         jnp.maximum(y[2 * m:3 * m], y[3 * m:4 * m]))
        pooled = jnp.maximum(ym + bc_ref[...], 0.0)                  # [m, 128] f32

        # fc1 with the flatten folded in: row-group rg of `pooled` pairs with
        # rows [rg*128, (rg+1)*128) of w1 (flatten order (H, W, C)).
        acc = None
        for rg in range(ng):
            part = jnp.dot(pooled[rg * bsz:(rg + 1) * bsz].astype(jnp.bfloat16),
                           w1_ref[rg * 128:(rg + 1) * 128, :],
                           preferred_element_type=jnp.float32)
            acc = part if acc is None else acc + part
        h1 = jnp.maximum(acc + b1_ref[...], 0.0)
        h2 = jnp.maximum(jnp.dot(h1.astype(jnp.bfloat16), w2_ref[...],
                                 preferred_element_type=jnp.float32) + b2_ref[...], 0.0)
        h3 = jnp.maximum(jnp.dot(h2.astype(jnp.bfloat16), w3_ref[...],
                                 preferred_element_type=jnp.float32) + b3_ref[...], 0.0)
        h4 = jnp.dot(h3.astype(jnp.bfloat16), w4_ref[...],
                     preferred_element_type=jnp.float32) + b4_ref[...]

        # Packed lane-dense output: four unmasked, 128-aligned slice stores.
        o_ref[:, 0:128] = h1
        o_ref[:, 128:256] = h2
        o_ref[:, 256:384] = h3
        o_ref[:, 384:512] = h4

    vmem = pl.BlockSpec(memory_space=pltpu.MemorySpace.VMEM)
    packed = pl.pallas_call(
        fused_kernel,
        out_shape=jax.ShapeDtypeStruct((bsz, 4 * 128), jnp.float32),
        in_specs=[vmem] * 11,
        out_specs=vmem,
    )(p, w_blk, b_conv, bf(w1), b1, bf(w2), b2, bf(w3p), b3p, bf(w4p), b4p)

    # Slice the packed buffer back into the 4 logical outputs.
    # TODO(synk): real PyTorch checkpoints flatten NCHW in (C, H, W) order and use
    # the true SeismicNet patch ordering; permute fc1 / conv weight rows when
    # loading a checkpoint (moot here: weights are synthetic).
    d3, nc = w3.shape[1], w4.shape[1]
    fc1 = packed[:, 0:128]
    fc2 = packed[:, 128:256]
    fc3 = packed[:, 256:256 + d3]
    fc_last = packed[:, 384:384 + nc]
    return fc_last, fc3, fc2, fc1


def deep_coral_forward(source, target, params):
    """DeepCORAL.forward: shared backbone on source and target.  Weights are
    shared, so both batches are concatenated and run through ONE fused forward
    (a single pallas_call total), then split back apart."""
    bs = source.shape[0]
    x = jnp.concatenate([source, target], axis=0)
    fc_last, fc3, fc2, fc1 = seismicnet_forward(x, params)
    return (fc_last[:bs], fc3[:bs], fc2[:bs], fc1[:bs],
            fc_last[bs:], fc3[bs:], fc2[bs:], fc1[bs:])


# ----------------------------------------------------------------------------
# Pure-JAX f32 reference (same synthetic backbone, (H,W,C) flatten order).
# ----------------------------------------------------------------------------
def reference_forward(x_nchw, params):
    conv_w, conv_b, fc_params = params
    x = jnp.transpose(x_nchw, (0, 2, 3, 1)).astype(jnp.float32)
    patches = lax.conv_general_dilated_patches(
        x, filter_shape=(3, 3), window_strides=(1, 1), padding='SAME',
        dimension_numbers=('NHWC', 'HWIO', 'NHWC'))
    b, h, w, kp = patches.shape
    conv = jnp.maximum(patches.reshape(b * h * w, kp) @ conv_w + conv_b, 0.0)
    conv = conv.reshape(b, h, w, -1)
    pooled = jnp.max(conv.reshape(b, h // 2, 2, w // 2, 2, conv.shape[-1]), axis=(2, 4))
    feat = pooled.reshape(b, -1)                              # (H, W, C) flatten
    (w1, b1), (w2, b2), (w3, b3), (w4, b4) = fc_params
    h1 = jnp.maximum(feat @ w1 + b1, 0.0)
    h2 = jnp.maximum(h1 @ w2 + b2, 0.0)
    h3 = jnp.maximum(h2 @ w3 + b3, 0.0)
    h4 = h3 @ w4 + b4
    return h4, h3, h2, h1


# ----------------------------------------------------------------------------
# Deterministic parameter init (f32 "logical" weights; bf16/pad prep is in-graph).
# ----------------------------------------------------------------------------
def init_params(key, in_ch=4, conv_oc=8, hw=16, num_classes=5):
    ks = jax.random.split(key, 10)
    scale = 0.05
    feat_dim = (hw // 2) * (hw // 2) * conv_oc                    # 8*8*8 = 512
    conv_w = scale * jax.random.normal(ks[0], (3 * 3 * in_ch, conv_oc), jnp.float32)
    conv_b = scale * jax.random.normal(ks[1], (1, conv_oc), jnp.float32)
    dims = [(feat_dim, 128), (128, 128), (128, 64), (64, num_classes)]
    fc_params = []
    for i, (din, dout) in enumerate(dims):
        w = scale * jax.random.normal(ks[2 + 2 * i], (din, dout), jnp.float32)
        b = scale * jax.random.normal(ks[3 + 2 * i], (1, dout), jnp.float32)
        fc_params.append((w, b))
    return (conv_w, conv_b, tuple(fc_params))


# ----------------------------------------------------------------------------
if __name__ == "__main__":
    key = jax.random.PRNGKey(0)
    k_src, k_tgt, k_par = jax.random.split(key, 3)

    B, C, H, W = 2, 4, 16, 16
    NUM_CLASSES = 5

    source = jax.random.normal(k_src, (B, C, H, W), jnp.float32)
    target = jax.random.normal(k_tgt, (B, C, H, W), jnp.float32)
    params = init_params(k_par, in_ch=C, conv_oc=8, hw=H, num_classes=NUM_CLASSES)

    fwd = jax.jit(deep_coral_forward)
    outs = jax.block_until_ready(fwd(source, target, params))

    expected_shapes = [
        (B, NUM_CLASSES), (B, 64), (B, 128), (B, 128),   # source: fc_last, fc3, fc2, fc1
        (B, NUM_CLASSES), (B, 64), (B, 128), (B, 128),   # target: fc_last, fc3, fc2, fc1
    ]
    assert len(outs) == 8
    for o, s in zip(outs, expected_shapes):
        assert o.shape == s, (o.shape, s)
        assert o.dtype == jnp.float32

    # Numerical check vs. the pure-JAX f32 reference (kernel uses bf16 matmuls,
    # so tolerances are loose but far below any structural-error scale).
    refs = (*reference_forward(source, params), *reference_forward(target, params))
    for idx, (o, r) in enumerate(zip(outs, refs)):
        err = float(jnp.max(jnp.abs(o - r)))
        assert jnp.allclose(o, r, rtol=8e-2, atol=3e-2), (idx, err)

    print("KERNEL_OK")
</pallas_src>

<mosaic_0001>
module attributes {stable_mosaic.version = 11 : i64} {
  func.func @fused_kernel(%arg0: memref<64x576xbf16, #tpu.memory_space<vmem>>, %arg1: memref<576x128xbf16, #tpu.memory_space<vmem>>, %arg2: memref<1x128xf32, #tpu.memory_space<vmem>>, %arg3: memref<512x128xbf16, #tpu.memory_space<vmem>>, %arg4: memref<1x128xf32, #tpu.memory_space<vmem>>, %arg5: memref<128x128xbf16, #tpu.memory_space<vmem>>, %arg6: memref<1x128xf32, #tpu.memory_space<vmem>>, %arg7: memref<128x128xbf16, #tpu.memory_space<vmem>>, %arg8: memref<1x128xf32, #tpu.memory_space<vmem>>, %arg9: memref<128x128xbf16, #tpu.memory_space<vmem>>, %arg10: memref<1x128xf32, #tpu.memory_space<vmem>>, %arg11: memref<4x512xf32, #tpu.memory_space<vmem>>) attributes {dimension_semantics = [], scalar_prefetch = 0 : i64, scratch_operands = 0 : i64, tpu.core_type = #tpu.core_type<tc>} {
    %c0 = arith.constant 0 : index
    %c0_0 = arith.constant 0 : index
    %0 = vector.load %arg0[%c0, %c0_0] : memref<64x576xbf16, #tpu.memory_space<vmem>>, vector<64x576xbf16>
    %c0_1 = arith.constant 0 : index
    %c0_2 = arith.constant 0 : index
    %1 = vector.load %arg1[%c0_1, %c0_2] : memref<576x128xbf16, #tpu.memory_space<vmem>>, vector<576x128xbf16>
    %cst = arith.constant dense<0.000000e+00> : vector<64x128xf32>
    %2 = tpu.matmul %0, %1, %cst {dimension_numbers = #tpu.dot_dimension_numbers<[1], [0], [0], [1], [0, 0, 1, 1], [], []>} : vector<64x576xbf16>, vector<576x128xbf16>, vector<64x128xf32> -> vector<64x128xf32>
    %3 = vector.extract_strided_slice %2 {offsets = [0, 0], sizes = [16, 128], strides = [1, 1]} : vector<64x128xf32> to vector<16x128xf32>
    %4 = vector.extract_strided_slice %2 {offsets = [16, 0], sizes = [16, 128], strides = [1, 1]} : vector<64x128xf32> to vector<16x128xf32>
    %5 = arith.maximumf %3, %4 : vector<16x128xf32>
    %6 = vector.extract_strided_slice %2 {offsets = [32, 0], sizes = [16, 128], strides = [1, 1]} : vector<64x128xf32> to vector<16x128xf32>
    %7 = vector.extract_strided_slice %2 {offsets = [48, 0], sizes = [16, 128], strides = [1, 1]} : vector<64x128xf32> to vector<16x128xf32>
    %8 = arith.maximumf %6, %7 : vector<16x128xf32>
    %9 = arith.maximumf %5, %8 : vector<16x128xf32>
    %c0_3 = arith.constant 0 : index
    %c0_4 = arith.constant 0 : index
    %10 = vector.load %arg2[%c0_3, %c0_4] : memref<1x128xf32, #tpu.memory_space<vmem>>, vector<1x128xf32>
    %11 = vector.broadcast %10 : vector<1x128xf32> to vector<16x128xf32>
    %12 = arith.addf %9, %11 : vector<16x128xf32>
    %cst_5 = arith.constant 0.000000e+00 : f32
    %13 = vector.broadcast %cst_5 : f32 to vector<16x128xf32>
    %14 = arith.maximumf %12, %13 : vector<16x128xf32>
    %15 = vector.extract_strided_slice %14 {offsets = [0, 0], sizes = [4, 128], strides = [1, 1]} : vector<16x128xf32> to vector<4x128xf32>
    %16 = arith.truncf %15 : vector<4x128xf32> to vector<4x128xbf16>
    %c0_6 = arith.constant 0 : index
    %c0_7 = arith.constant 0 : index
    %17 = vector.load %arg3[%c0_6, %c0_7] : memref<512x128xbf16, #tpu.memory_space<vmem>>, vector<128x128xbf16>
    %cst_8 = arith.constant dense<0.000000e+00> : vector<4x128xf32>
    %18 = tpu.matmul %16, %17, %cst_8 {dimension_numbers = #tpu.dot_dimension_numbers<[1], [0], [0], [1], [0, 0, 1, 1], [], []>} : vector<4x128xbf16>, vector<128x128xbf16>, vector<4x128xf32> -> vector<4x128xf32>
    %19 = vector.extract_strided_slice %14 {offsets = [4, 0], sizes = [4, 128], strides = [1, 1]} : vector<16x128xf32> to vector<4x128xf32>
    %20 = arith.truncf %19 : vector<4x128xf32> to vector<4x128xbf16>
    %c128 = arith.constant 128 : index
    %c0_9 = arith.constant 0 : index
    %21 = vector.load %arg3[%c128, %c0_9] : memref<512x128xbf16, #tpu.memory_space<vmem>>, vector<128x128xbf16>
    %cst_10 = arith.constant dense<0.000000e+00> : vector<4x128xf32>
    %22 = tpu.matmul %20, %21, %cst_10 {dimension_numbers = #tpu.dot_dimension_numbers<[1], [0], [0], [1], [0, 0, 1, 1], [], []>} : vector<4x128xbf16>, vector<128x128xbf16>, vector<4x128xf32> -> vector<4x128xf32>
    %23 = arith.addf %18, %22 : vector<4x128xf32>
    %24 = vector.extract_strided_slice %14 {offsets = [8, 0], sizes = [4, 128], strides = [1, 1]} : vector<16x128xf32> to vector<4x128xf32>
    %25 = arith.truncf %24 : vector<4x128xf32> to vector<4x128xbf16>
    %c256 = arith.constant 256 : index
    %c0_11 = arith.constant 0 : index
    %26 = vector.load %arg3[%c256, %c0_11] : memref<512x128xbf16, #tpu.memory_space<vmem>>, vector<128x128xbf16>
    %cst_12 = arith.constant dense<0.000000e+00> : vector<4x128xf32>
    %27 = tpu.matmul %25, %26, %cst_12 {dimension_numbers = #tpu.dot_dimension_numbers<[1], [0], [0], [1], [0, 0, 1, 1], [], []>} : vector<4x128xbf16>, vector<128x128xbf16>, vector<4x128xf32> -> vector<4x128xf32>
    %28 = arith.addf %23, %27 : vector<4x128xf32>
    %29 = vector.extract_strided_slice %14 {offsets = [12, 0], sizes = [4, 128], strides = [1, 1]} : vector<16x128xf32> to vector<4x128xf32>
    %30 = arith.truncf %29 : vector<4x128xf32> to vector<4x128xbf16>
    %c384 = arith.constant 384 : index
    %c0_13 = arith.constant 0 : index
    %31 = vector.load %arg3[%c384, %c0_13] : memref<512x128xbf16, #tpu.memory_space<vmem>>, vector<128x128xbf16>
    %cst_14 = arith.constant dense<0.000000e+00> : vector<4x128xf32>
    %32 = tpu.matmul %30, %31, %cst_14 {dimension_numbers = #tpu.dot_dimension_numbers<[1], [0], [0], [1], [0, 0, 1, 1], [], []>} : vector<4x128xbf16>, vector<128x128xbf16>, vector<4x128xf32> -> vector<4x128xf32>
    %33 = arith.addf %28, %32 : vector<4x128xf32>
    %c0_15 = arith.constant 0 : index
    %c0_16 = arith.constant 0 : index
    %34 = vector.load %arg4[%c0_15, %c0_16] : memref<1x128xf32, #tpu.memory_space<vmem>>, vector<1x128xf32>
    %35 = vector.broadcast %34 : vector<1x128xf32> to vector<4x128xf32>
    %36 = arith.addf %33, %35 : vector<4x128xf32>
    %cst_17 = arith.constant 0.000000e+00 : f32
    %37 = vector.broadcast %cst_17 : f32 to vector<4x128xf32>
    %38 = arith.maximumf %36, %37 : vector<4x128xf32>
    %39 = arith.truncf %38 : vector<4x128xf32> to vector<4x128xbf16>
    %c0_18 = arith.constant 0 : index
    %c0_19 = arith.constant 0 : index
    %40 = vector.load %arg5[%c0_18, %c0_19] : memref<128x128xbf16, #tpu.memory_space<vmem>>, vector<128x128xbf16>
    %cst_20 = arith.constant dense<0.000000e+00> : vector<4x128xf32>
    %41 = tpu.matmul %39, %40, %cst_20 {dimension_numbers = #tpu.dot_dimension_numbers<[1], [0], [0], [1], [0, 0, 1, 1], [], []>} : vector<4x128xbf16>, vector<128x128xbf16>, vector<4x128xf32> -> vector<4x128xf32>
    %c0_21 = arith.constant 0 : index
    %c0_22 = arith.constant 0 : index
    %42 = vector.load %arg6[%c0_21, %c0_22] : memref<1x128xf32, #tpu.memory_space<vmem>>, vector<1x128xf32>
    %43 = vector.broadcast %42 : vector<1x128xf32> to vector<4x128xf32>
    %44 = arith.addf %41, %43 : vector<4x128xf32>
    %cst_23 = arith.constant 0.000000e+00 : f32
    %45 = vector.broadcast %cst_23 : f32 to vector<4x128xf32>
    %46 = arith.maximumf %44, %45 : vector<4x128xf32>
    %47 = arith.truncf %46 : vector<4x128xf32> to vector<4x128xbf16>
    %c0_24 = arith.constant 0 : index
    %c0_25 = arith.constant 0 : index
    %48 = vector.load %arg7[%c0_24, %c0_25] : memref<128x128xbf16, #tpu.memory_space<vmem>>, vector<128x128xbf16>
    %cst_26 = arith.constant dense<0.000000e+00> : vector<4x128xf32>
    %49 = tpu.matmul %47, %48, %cst_26 {dimension_numbers = #tpu.dot_dimension_numbers<[1], [0], [0], [1], [0, 0, 1, 1], [], []>} : vector<4x128xbf16>, vector<128x128xbf16>, vector<4x128xf32> -> vector<4x128xf32>
    %c0_27 = arith.constant 0 : index
    %c0_28 = arith.constant 0 : index
    %50 = vector.load %arg8[%c0_27, %c0_28] : memref<1x128xf32, #tpu.memory_space<vmem>>, vector<1x128xf32>
    %51 = vector.broadcast %50 : vector<1x128xf32> to vector<4x128xf32>
    %52 = arith.addf %49, %51 : vector<4x128xf32>
    %cst_29 = arith.constant 0.000000e+00 : f32
    %53 = vector.broadcast %cst_29 : f32 to vector<4x128xf32>
    %54 = arith.maximumf %52, %53 : vector<4x128xf32>
    %55 = arith.truncf %54 : vector<4x128xf32> to vector<4x128xbf16>
    %c0_30 = arith.constant 0 : index
    %c0_31 = arith.constant 0 : index
    %56 = vector.load %arg9[%c0_30, %c0_31] : memref<128x128xbf16, #tpu.memory_space<vmem>>, vector<128x128xbf16>
    %cst_32 = arith.constant dense<0.000000e+00> : vector<4x128xf32>
    %57 = tpu.matmul %55, %56, %cst_32 {dimension_numbers = #tpu.dot_dimension_numbers<[1], [0], [0], [1], [0, 0, 1, 1], [], []>} : vector<4x128xbf16>, vector<128x128xbf16>, vector<4x128xf32> -> vector<4x128xf32>
    %c0_33 = arith.constant 0 : index
    %c0_34 = arith.constant 0 : index
    %58 = vector.load %arg10[%c0_33, %c0_34] : memref<1x128xf32, #tpu.memory_space<vmem>>, vector<1x128xf32>
    %59 = vector.broadcast %58 : vector<1x128xf32> to vector<4x128xf32>
    %60 = arith.addf %57, %59 : vector<4x128xf32>
    %c0_35 = arith.constant 0 : index
    %c0_36 = arith.constant 0 : index
    %61 = vector.load %arg11[%c0_35, %c0_36] : memref<4x512xf32, #tpu.memory_space<vmem>>, vector<4x128xf32>
    tpu.vector_store %arg11[%c0_35, %c0_36], %38 {strides = array<i32>} : memref<4x512xf32, #tpu.memory_space<vmem>>, vector<4x128xf32>,
    %c0_37 = arith.constant 0 : index
    %c128_38 = arith.constant 128 : index
    %62 = vector.load %arg11[%c0_37, %c128_38] : memref<4x512xf32, #tpu.memory_space<vmem>>, vector<4x128xf32>
    tpu.vector_store %arg11[%c0_37, %c128_38], %46 {strides = array<i32>} : memref<4x512xf32, #tpu.memory_space<vmem>>, vector<4x128xf32>,
    %c0_39 = arith.constant 0 : index
    %c256_40 = arith.constant 256 : index
    %63 = vector.load %arg11[%c0_39, %c256_40] : memref<4x512xf32, #tpu.memory_space<vmem>>, vector<4x128xf32>
    tpu.vector_store %arg11[%c0_39, %c256_40], %54 {strides = array<i32>} : memref<4x512xf32, #tpu.memory_space<vmem>>, vector<4x128xf32>,
    %c0_41 = arith.constant 0 : index
    %c384_42 = arith.constant 384 : index
    %64 = vector.load %arg11[%c0_41, %c384_42] : memref<4x512xf32, #tpu.memory_space<vmem>>, vector<4x128xf32>
    tpu.vector_store %arg11[%c0_41, %c384_42], %60 {strides = array<i32>} : memref<4x512xf32, #tpu.memory_space<vmem>>, vector<4x128xf32>,
    return
  }
}

</mosaic_0001>

<llo_original>
// kernel: deep_coral_forward.1
$region0: #{deep_coral_forward.1}
  #allocation0 [shape = 'u32[]', space=smem, size = 0x4, offset = 0x4, fixed_abs, tag = 'smem constant byte address 0x4 - core index']
  #allocation1 [shape = 'u32[144,128]{1,0:T(1,128)}', space=vmem, size = 0x12000, scoped, tag = 'internal scratch']
  %s0 = inlined_call_operand.vmem [shape: bf16[64,576], index: 0, kind: input, shape index: {}]
  %s1 = inlined_call_operand.vmem [shape: bf16[576,128], index: 1, kind: input, shape index: {}]
  %s2 = inlined_call_operand.vmem [shape: f32[1,128], index: 2, kind: input, shape index: {}]
  %s3 = inlined_call_operand.vmem [shape: bf16[512,128], index: 3, kind: input, shape index: {}]
  %s4 = inlined_call_operand.vmem [shape: f32[1,128], index: 4, kind: input, shape index: {}]
  %s5 = inlined_call_operand.vmem [shape: bf16[128,128], index: 5, kind: input, shape index: {}]
  %s6 = inlined_call_operand.vmem [shape: f32[1,128], index: 6, kind: input, shape index: {}]
  %s7 = inlined_call_operand.vmem [shape: bf16[128,128], index: 7, kind: input, shape index: {}]
  %s8 = inlined_call_operand.vmem [shape: f32[1,128], index: 8, kind: input, shape index: {}]
  %s9 = inlined_call_operand.vmem [shape: bf16[128,128], index: 9, kind: input, shape index: {}]
  %s10 = inlined_call_operand.vmem [shape: f32[1,128], index: 10, kind: input, shape index: {}]
  %s11 = inlined_call_operand.vmem [shape: f32[4,512], index: 11, kind: output, shape index: {}]
  %s12 = sld [smem:[#allocation0]]
  $region54: #{deep_coral_forward.1} parent=0
    _
  %s14 = ssub.s32 1, %s12
  %s15 = scalar_select 0, %s14, %s12
  // Predicated region
  $region2: #{deep_coral_forward.1} parent=0 // pred_check
    _
  $region3: #{deep_coral_forward.1} parent=0 // pred_check_branch
    %17 = sbr.rel (0) target = $region5
  $region4: #{deep_coral_forward.1} parent=0 // pred_region
    _
  $region5: #{deep_coral_forward.1} parent=0 // pred_fallthru
    _
  // Predicated region
  $region6: #{deep_coral_forward.1} parent=0 // pred_check
    _
  $region7: #{deep_coral_forward.1} parent=0 // pred_check_branch
    %19 = sbr.rel (0) target = $region9
  $region8: #{deep_coral_forward.1} parent=0 // pred_region
    _
  $region9: #{deep_coral_forward.1} parent=0 // pred_fallthru
    _
  // Predicated region
  $region10: #{deep_coral_forward.1} parent=0 // pred_check
    _
  $region11: #{deep_coral_forward.1} parent=0 // pred_check_branch
    %21 = sbr.rel (0) target = $region13
  $region12: #{deep_coral_forward.1} parent=0 // pred_region
    _
  $region13: #{deep_coral_forward.1} parent=0 // pred_fallthru
    _
  // Predicated region
  $region14: #{deep_coral_forward.1} parent=0 // pred_check
    _
  $region15: #{deep_coral_forward.1} parent=0 // pred_check_branch
    %23 = sbr.rel (0) target = $region17
  $region16: #{deep_coral_forward.1} parent=0 // pred_region
    _
  $region17: #{deep_coral_forward.1} parent=0 // pred_fallthru
    _
  // Predicated region
  $region18: #{deep_coral_forward.1} parent=0 // pred_check
    _
  $region19: #{deep_coral_forward.1} parent=0 // pred_check_branch
    %25 = sbr.rel (0) target = $region21
  $region20: #{deep_coral_forward.1} parent=0 // pred_region
    _
  $region21: #{deep_coral_forward.1} parent=0 // pred_fallthru
    _
  // Predicated region
  $region22: #{deep_coral_forward.1} parent=0 // pred_check
    _
  $region23: #{deep_coral_forward.1} parent=0 // pred_check_branch
    %27 = sbr.rel (0) target = $region25
  $region24: #{deep_coral_forward.1} parent=0 // pred_region
    _
  $region25: #{deep_coral_forward.1} parent=0 // pred_fallthru
    _
  // Predicated region
  $region26: #{deep_coral_forward.1} parent=0 // pred_check
    _
  $region27: #{deep_coral_forward.1} parent=0 // pred_check_branch
    %29 = sbr.rel (0) target = $region29
  $region28: #{deep_coral_forward.1} parent=0 // pred_region
    _
  $region29: #{deep_coral_forward.1} parent=0 // pred_fallthru
    _
  // Predicated region
  $region30: #{deep_coral_forward.1} parent=0 // pred_check
    _
  $region31: #{deep_coral_forward.1} parent=0 // pred_check_branch
    %31 = sbr.rel (0) target = $region33
  $region32: #{deep_coral_forward.1} parent=0 // pred_region
    _
  $region33: #{deep_coral_forward.1} parent=0 // pred_fallthru
    _
  // Predicated region
  $region34: #{deep_coral_forward.1} parent=0 // pred_check
    _
  $region35: #{deep_coral_forward.1} parent=0 // pred_check_branch
    %33 = sbr.rel (0) target = $region37
  $region36: #{deep_coral_forward.1} parent=0 // pred_region
    _
  $region37: #{deep_coral_forward.1} parent=0 // pred_fallthru
    _
  // Predicated region
  $region38: #{deep_coral_forward.1} parent=0 // pred_check
    _
  $region39: #{deep_coral_forward.1} parent=0 // pred_check_branch
    %35 = sbr.rel (0) target = $region41
  $region40: #{deep_coral_forward.1} parent=0 // pred_region
    _
  $region41: #{deep_coral_forward.1} parent=0 // pred_fallthru
    _
  // Predicated region
  $region42: #{deep_coral_forward.1} parent=0 // pred_check
    _
  $region43: #{deep_coral_forward.1} parent=0 // pred_check_branch
    %37 = sbr.rel (0) target = $region45
  $region44: #{deep_coral_forward.1} parent=0 // pred_region
    _
  $region45: #{deep_coral_forward.1} parent=0 // pred_fallthru
    _
  %v39 = vld [vmem:[%s0] sm:$0xff]
  %v40 = vld [vmem:[%s0 + $0x8] sm:$0xff]
  %v41 = vld [vmem:[%s0 + $0x10] sm:$0xf]
  %v42 = vld [vmem:[%s0 + $0x14] sm:$0xff]
  %v43 = vld [vmem:[%s0 + $0x1c] sm:$0xff]
  %v44 = vld [vmem:[%s0 + $0x24] sm:$0xf]
  %v45 = vld [vmem:[%s0 + $0x28] sm:$0xff]
  %v46 = vld [vmem:[%s0 + $0x30] sm:$0xff]
  %v47 = vld [vmem:[%s0 + $0x38] sm:$0xf]
  %v48 = vld [vmem:[%s0 + $0x3c] sm:$0xff]
  %v49 = vld [vmem:[%s0 + $0x44] sm:$0xff]
  %v50 = vld [vmem:[%s0 + $0x4c] sm:$0xf]
  %v51 = vld [vmem:[%s0 + $0x50] sm:$0xff]
  %v52 = vld [vmem:[%s0 + $0x58] sm:$0xff]
  %v53 = vld [vmem:[%s0 + $0x60] sm:$0xf]
  %v54 = vld [vmem:[%s0 + $0x64] sm:$0xff]
  %v55 = vld [vmem:[%s0 + $0x6c] sm:$0xff]
  %v56 = vld [vmem:[%s0 + $0x74] sm:$0xf]
  %v57 = vld [vmem:[%s0 + $0x78] sm:$0xff]
  %v58 = vld [vmem:[%s0 + $0x80] sm:$0xff]
  %v59 = vld [vmem:[%s0 + $0x88] sm:$0xf]
  %v60 = vld [vmem:[%s0 + $0x8c] sm:$0xff]
  %v61 = vld [vmem:[%s0 + $0x94] sm:$0xff]
  %v62 = vld [vmem:[%s0 + $0x9c] sm:$0xf]
  %v63 = vld [vmem:[%s1] sm:$0xf]
  %v64 = vld [vmem:[%s1 + $0x4] sm:$0xf]
  %v65 = vld [vmem:[%s1 + $0x8] sm:$0xf]
  %v66 = vld [vmem:[%s1 + $0xc] sm:$0xf]
  %v67 = vld [vmem:[%s1 + $0x10] sm:$0xf]
  %v68 = vld [vmem:[%s1 + $0x14] sm:$0xf]
  %v69 = vld [vmem:[%s1 + $0x18] sm:$0xf]
  %v70 = vld [vmem:[%s1 + $0x1c] sm:$0xf]
  %v71 = vld [vmem:[%s1 + $0x20] sm:$0xf]
  %v72 = vld [vmem:[%s1 + $0x24] sm:$0xf]
  %v73 = vld [vmem:[%s1 + $0x28] sm:$0xf]
  %v74 = vld [vmem:[%s1 + $0x2c] sm:$0xf]
  %v75 = vld [vmem:[%s1 + $0x30] sm:$0xf]
  %v76 = vld [vmem:[%s1 + $0x34] sm:$0xf]
  %v77 = vld [vmem:[%s1 + $0x38] sm:$0xf]
  %v78 = vld [vmem:[%s1 + $0x3c] sm:$0xf]
  %v79 = vld [vmem:[%s1 + $0x40] sm:$0xf]
  %v80 = vld [vmem:[%s1 + $0x44] sm:$0xf]
  %v81 = vld [vmem:[%s1 + $0x48] sm:$0xf]
  %v82 = vld [vmem:[%s1 + $0x4c] sm:$0xf]
  %v83 = vld [vmem:[%s1 + $0x50] sm:$0xf]
  %v84 = vld [vmem:[%s1 + $0x54] sm:$0xf]
  %v85 = vld [vmem:[%s1 + $0x58] sm:$0xf]
  %v86 = vld [vmem:[%s1 + $0x5c] sm:$0xf]
  %v87 = vld [vmem:[%s1 + $0x60] sm:$0xf]
  %v88 = vld [vmem:[%s1 + $0x64] sm:$0xf]
  %v89 = vld [vmem:[%s1 + $0x68] sm:$0xf]
  %v90 = vld [vmem:[%s1 + $0x6c] sm:$0xf]
  %v91 = vld [vmem:[%s1 + $0x70] sm:$0xf]
  %v92 = vld [vmem:[%s1 + $0x74] sm:$0xf]
  %v93 = vld [vmem:[%s1 + $0x78] sm:$0xf]
  %v94 = vld [vmem:[%s1 + $0x7c] sm:$0xf]
  %v95 = vld [vmem:[%s1 + $0x80] sm:$0xf]
  %v96 = vld [vmem:[%s1 + $0x84] sm:$0xf]
  %v97 = vld [vmem:[%s1 + $0x88] sm:$0xf]
  %v98 = vld [vmem:[%s1 + $0x8c] sm:$0xf]
  %v99 = vld [vmem:[%s1 + $0x90] sm:$0xf]
  %v100 = vld [vmem:[%s1 + $0x94] sm:$0xf]
  %v101 = vld [vmem:[%s1 + $0x98] sm:$0xf]
  %v102 = vld [vmem:[%s1 + $0x9c] sm:$0xf]
  %v103 = vld [vmem:[%s1 + $0xa0] sm:$0xf]
  %v104 = vld [vmem:[%s1 + $0xa4] sm:$0xf]
  %v105 = vld [vmem:[%s1 + $0xa8] sm:$0xf]
  %v106 = vld [vmem:[%s1 + $0xac] sm:$0xf]
  %v107 = vld [vmem:[%s1 + $0xb0] sm:$0xf]
  %v108 = vld [vmem:[%s1 + $0xb4] sm:$0xf]
  %v109 = vld [vmem:[%s1 + $0xb8] sm:$0xf]
  %v110 = vld [vmem:[%s1 + $0xbc] sm:$0xf]
  %v111 = vld [vmem:[%s1 + $0xc0] sm:$0xf]
  %v112 = vld [vmem:[%s1 + $0xc4] sm:$0xf]
  %v113 = vld [vmem:[%s1 + $0xc8] sm:$0xf]
  %v114 = vld [vmem:[%s1 + $0xcc] sm:$0xf]
  %v115 = vld [vmem:[%s1 + $0xd0] sm:$0xf]
  %v116 = vld [vmem:[%s1 + $0xd4] sm:$0xf]
  %v117 = vld [vmem:[%s1 + $0xd8] sm:$0xf]
  %v118 = vld [vmem:[%s1 + $0xdc] sm:$0xf]
  %v119 = vld [vmem:[%s1 + $0xe0] sm:$0xf]
  %v120 = vld [vmem:[%s1 + $0xe4] sm:$0xf]
  %v121 = vld [vmem:[%s1 + $0xe8] sm:$0xf]
  %v122 = vld [vmem:[%s1 + $0xec] sm:$0xf]
  %v123 = vld [vmem:[%s1 + $0xf0] sm:$0xf]
  %v124 = vld [vmem:[%s1 + $0xf4] sm:$0xf]
  %v125 = vld [vmem:[%s1 + $0xf8] sm:$0xf]
  %v126 = vld [vmem:[%s1 + $0xfc] sm:$0xf]
  %v127 = vld [vmem:[%s1 + $0x100] sm:$0xf]
  %v128 = vld [vmem:[%s1 + $0x104] sm:$0xf]
  %v129 = vld [vmem:[%s1 + $0x108] sm:$0xf]
  %v130 = vld [vmem:[%s1 + $0x10c] sm:$0xf]
  %v131 = vld [vmem:[%s1 + $0x110] sm:$0xf]
  %v132 = vld [vmem:[%s1 + $0x114] sm:$0xf]
  %v133 = vld [vmem:[%s1 + $0x118] sm:$0xf]
  %v134 = vld [vmem:[%s1 + $0x11c] sm:$0xf]
  %v159 = vunpack.c.l.b16 %v39
  %v160 = vunpack.c.h.b16 %v39
  %v161 = vunpack.c.l.b16 %v40
  %v162 = vunpack.c.h.b16 %v40
  %v163 = vunpack.c.l.b16 %v41
  %v164 = vunpack.c.l.b16 %v42
  %v165 = vunpack.c.h.b16 %v42
  %v166 = vunpack.c.l.b16 %v43
  %v167 = vunpack.c.h.b16 %v43
  %v168 = vunpack.c.l.b16 %v44
  %v169 = vunpack.c.l.b16 %v45
  %v170 = vunpack.c.h.b16 %v45
  %v171 = vunpack.c.l.b16 %v46
  %v172 = vunpack.c.h.b16 %v46
  %v173 = vunpack.c.l.b16 %v47
  %v174 = vunpack.c.l.b16 %v48
  %v175 = vunpack.c.h.b16 %v48
  %v176 = vunpack.c.l.b16 %v49
  %v177 = vunpack.c.h.b16 %v49
  %v178 = vunpack.c.l.b16 %v50
  %v179 = vunpack.c.l.b16 %v51
  %v180 = vunpack.c.h.b16 %v51
  %v181 = vunpack.c.l.b16 %v52
  %v182 = vunpack.c.h.b16 %v52
  %v183 = vunpack.c.l.b16 %v53
  %v184 = vunpack.c.l.b16 %v54
  %v185 = vunpack.c.h.b16 %v54
  %v186 = vunpack.c.l.b16 %v55
  %v187 = vunpack.c.h.b16 %v55
  %v188 = vunpack.c.l.b16 %v56
  %v189 = vunpack.c.l.b16 %v57
  %v190 = vunpack.c.h.b16 %v57
  %v191 = vunpack.c.l.b16 %v58
  %v192 = vunpack.c.h.b16 %v58
  %v193 = vunpack.c.l.b16 %v59
  %v194 = vunpack.c.l.b16 %v60
  %v195 = vunpack.c.h.b16 %v60
  %v196 = vunpack.c.l.b16 %v61
  %v197 = vunpack.c.h.b16 %v61
  %v198 = vunpack.c.l.b16 %v62
  %v199 = vpack.c.b16 %v164, %v159
  %v200 = vpack.c.b16 %v165, %v160
  %v201 = vpack.c.b16 %v166, %v161
  %v202 = vpack.c.b16 %v167, %v162
  %v203 = vpack.c.b16 %v168, %v163
  %v204 = vpack.c.b16 %v174, %v169
  %v205 = vpack.c.b16 %v175, %v170
  %v206 = vpack.c.b16 %v176, %v171
  %v207 = vpack.c.b16 %v177, %v172
  %v208 = vpack.c.b16 %v178, %v173
  %v209 = vpack.c.b16 %v184, %v179
  %v210 = vpack.c.b16 %v185, %v180
  %v211 = vpack.c.b16 %v186, %v181
  %v212 = vpack.c.b16 %v187, %v182
  %v213 = vpack.c.b16 %v188, %v183
  %v214 = vpack.c.b16 %v194, %v189
  %v215 = vpack.c.b16 %v195, %v190
  %v216 = vpack.c.b16 %v196, %v191
  %v217 = vpack.c.b16 %v197, %v192
  %v218 = vpack.c.b16 %v198, %v193
  %v307 = vunpack.c.l.b16 %v63
  %v308 = vunpack.c.l.b16 %v64
  %v309 = vunpack.c.l.b16 %v65
  %v310 = vunpack.c.l.b16 %v66
  %v311 = vunpack.c.l.b16 %v67
  %v312 = vunpack.c.l.b16 %v68
  %v313 = vunpack.c.l.b16 %v69
  %v314 = vunpack.c.l.b16 %v70
  %v315 = vunpack.c.l.b16 %v71
  %v316 = vunpack.c.l.b16 %v72
  %v317 = vunpack.c.l.b16 %v73
  %v318 = vunpack.c.l.b16 %v74
  %v319 = vunpack.c.l.b16 %v75
  %v320 = vunpack.c.l.b16 %v76
  %v321 = vunpack.c.l.b16 %v77
  %v322 = vunpack.c.l.b16 %v78
  %v323 = vunpack.c.l.b16 %v79
  %v324 = vunpack.c.l.b16 %v80
  %v325 = vunpack.c.l.b16 %v81
  %v326 = vunpack.c.l.b16 %v82
  %v327 = vunpack.c.l.b16 %v83
  %v328 = vunpack.c.l.b16 %v84
  %v329 = vunpack.c.l.b16 %v85
  %v330 = vunpack.c.l.b16 %v86
  %v331 = vunpack.c.l.b16 %v87
  %v332 = vunpack.c.l.b16 %v88
  %v333 = vunpack.c.l.b16 %v89
  %v334 = vunpack.c.l.b16 %v90
  %v335 = vunpack.c.l.b16 %v91
  %v336 = vunpack.c.l.b16 %v92
  %v337 = vunpack.c.l.b16 %v93
  %v338 = vunpack.c.l.b16 %v94
  %v339 = vunpack.c.l.b16 %v95
  %v340 = vunpack.c.l.b16 %v96
  %v341 = vunpack.c.l.b16 %v97
  %v342 = vunpack.c.l.b16 %v98
  %v343 = vunpack.c.l.b16 %v99
  %v344 = vunpack.c.l.b16 %v100
  %v345 = vunpack.c.l.b16 %v101
  %v346 = vunpack.c.l.b16 %v102
  %v347 = vunpack.c.l.b16 %v103
  %v348 = vunpack.c.l.b16 %v104
  %v349 = vunpack.c.l.b16 %v105
  %v350 = vunpack.c.l.b16 %v106
  %v351 = vunpack.c.l.b16 %v107
  %v352 = vunpack.c.l.b16 %v108
  %v353 = vunpack.c.l.b16 %v109
  %v354 = vunpack.c.l.b16 %v110
  %v355 = vunpack.c.l.b16 %v111
  %v356 = vunpack.c.l.b16 %v112
  %v357 = vunpack.c.l.b16 %v113
  %v358 = vunpack.c.l.b16 %v114
  %v359 = vunpack.c.l.b16 %v115
  %v360 = vunpack.c.l.b16 %v116
  %v361 = vunpack.c.l.b16 %v117
  %v362 = vunpack.c.l.b16 %v118
  %v363 = vunpack.c.l.b16 %v119
  %v364 = vunpack.c.l.b16 %v120
  %v365 = vunpack.c.l.b16 %v121
  %v366 = vunpack.c.l.b16 %v122
  %v367 = vunpack.c.l.b16 %v123
  %v368 = vunpack.c.l.b16 %v124
  %v369 = vunpack.c.l.b16 %v125
  %v370 = vunpack.c.l.b16 %v126
  %v371 = vunpack.c.l.b16 %v127
  %v372 = vunpack.c.l.b16 %v128
  %v373 = vunpack.c.l.b16 %v129
  %v374 = vunpack.c.l.b16 %v130
  %v375 = vunpack.c.l.b16 %v131
  %v376 = vunpack.c.l.b16 %v132
  %v377 = vunpack.c.l.b16 %v133
  %v378 = vunpack.c.l.b16 %v134
  %v379 = vpack.c.b16 %v308, %v307
  %v380 = vpack.c.b16 %v310, %v309
  %v381 = vpack.c.b16 %v312, %v311
  %v382 = vpack.c.b16 %v314, %v313
  %v383 = vpack.c.b16 %v316, %v315
  %v384 = vpack.c.b16 %v318, %v317
  %v385 = vpack.c.b16 %v320, %v319
  %v386 = vpack.c.b16 %v322, %v321
  %v387 = vpack.c.b16 %v324, %v323
  %v388 = vpack.c.b16 %v326, %v325
  %v389 = vpack.c.b16 %v328, %v327
  %v390 = vpack.c.b16 %v330, %v329
  %v391 = vpack.c.b16 %v332, %v331
  %v392 = vpack.c.b16 %v334, %v333
  %v393 = vpack.c.b16 %v336, %v335
  %v394 = vpack.c.b16 %v338, %v337
  %v395 = vpack.c.b16 %v340, %v339
  %v396 = vpack.c.b16 %v342, %v341
  %v397 = vpack.c.b16 %v344, %v343
  %v398 = vpack.c.b16 %v346, %v345
  %v399 = vpack.c.b16 %v348, %v347
  %v400 = vpack.c.b16 %v350, %v349
  %v401 = vpack.c.b16 %v352, %v351
  %v402 = vpack.c.b16 %v354, %v353
  %v403 = vpack.c.b16 %v356, %v355
  %v404 = vpack.c.b16 %v358, %v357
  %v405 = vpack.c.b16 %v360, %v359
  %v406 = vpack.c.b16 %v362, %v361
  %v407 = vpack.c.b16 %v364, %v363
  %v408 = vpack.c.b16 %v366, %v365
  %v409 = vpack.c.b16 %v368, %v367
  %v410 = vpack.c.b16 %v370, %v369
  %v411 = vpack.c.b16 %v372, %v371
  %v412 = vpack.c.b16 %v374, %v373
  %v413 = vpack.c.b16 %v376, %v375
  %v414 = vpack.c.b16 %v378, %v377
  %vm451 = vcmask 523264
  %v453 = vsel %vm451, %v203, 0
  %v456 = vsel %vm451, %v208, 0
  %v459 = vsel %vm451, %v213, 0
  %v462 = vsel %vm451, %v218, 0
  %464 = vmatprep.subr.bf16.mxu0 0
  %465 = vmatpush1.bf16.msra.mxu0 %v386
  %466 = vmatprep.subr.bf16.mxu0 0
  %467 = vmatpush1.bf16.msra.mxu0 %v385
  %468 = vmatprep.subr.bf16.mxu0 0
  %469 = vmatpush1.bf16.msra.mxu0 %v384
  %470 = vmatprep.subr.bf16.mxu0 0
  %471 = vmatpush1.bf16.msra.mxu0 %v383
  %472 = vmatprep.subr.bf16.mxu0 0
  %473 = vmatpush1.bf16.msra.mxu0 %v382
  %474 = vmatprep.subr.bf16.mxu0 0
  %475 = vmatpush1.bf16.msra.mxu0 %v381
  %476 = vmatprep.subr.bf16.mxu0 0
  %477 = vmatpush1.bf16.msra.mxu0 %v380
  %478 = vmatprep.subr.bf16.mxu0 0
  %479 = vmatpush1.bf16.msra.mxu0 %v379
  %480 = vmatprep.subr.bf16.mxu0 0
  %481 = vmatpush2.bf16.msra.mxu0 %v394
  %482 = vmatprep.subr.bf16.mxu0 0
  %483 = vmatpush2.bf16.msra.mxu0 %v393
  %484 = vmatprep.subr.bf16.mxu0 0
  %485 = vmatpush2.bf16.msra.mxu0 %v392
  %486 = vmatprep.subr.bf16.mxu0 0
  %487 = vmatpush2.bf16.msra.mxu0 %v391
  %488 = vmatprep.subr.bf16.mxu0 0
  %489 = vmatpush2.bf16.msra.mxu0 %v390
  %490 = vmatprep.subr.bf16.mxu0 0
  %491 = vmatpush2.bf16.msra.mxu0 %v389
  %492 = vmatprep.subr.bf16.mxu0 0
  %493 = vmatpush2.bf16.msra.mxu0 %v388
  %494 = vmatprep.subr.bf16.mxu0 0
  %495 = vmatpush2.bf16.msra.mxu0 %v387
  %496 = vmatprep.mubr.bf16.mxu0 %v200
  %497 = vmatmul.mubr.bf16.gmra.mxu0 %v199
  %v498 = vpop.f32.mrf.mxu0
  %v499 = vadd.f32 0.0, %v498
  %v500 = vpop.f32.mrf.mxu0
  %v501 = vpop.f32.mrf.mxu0
  %v502 = vadd.f32 0.0, %v501
  %v503 = vpop.f32.mrf.mxu0
  %504 = vmatprep.mubr.bf16.mxu0 %v205
  %505 = vmatmul.mubr.bf16.gmra.mxu0 %v204
  %v506 = vpop.f32.mrf.mxu0
  %v507 = vadd.f32 0.0, %v506
  %v508 = vpop.f32.mrf.mxu0
  %v509 = vpop.f32.mrf.mxu0
  %v510 = vadd.f32 0.0, %v509
  %v511 = vpop.f32.mrf.mxu0
  %512 = vmatprep.mubr.bf16.mxu0 %v210
  %513 = vmatmul.mubr.bf16.gmra.mxu0 %v209
  %v514 = vpop.f32.mrf.mxu0
  %v515 = vadd.f32 0.0, %v514
  %v516 = vpop.f32.mrf.mxu0
  %v517 = vpop.f32.mrf.mxu0
  %v518 = vadd.f32 0.0, %v517
  %v519 = vpop.f32.mrf.mxu0
  %520 = vmatprep.mubr.bf16.mxu0 %v215
  %521 = vmatmul.mubr.bf16.gmra.mxu0 %v214
  %v522 = vpop.f32.mrf.mxu0
  %v523 = vadd.f32 0.0, %v522
  %v524 = vpop.f32.mrf.mxu0
  %v525 = vpop.f32.mrf.mxu0
  %v526 = vadd.f32 0.0, %v525
  %v527 = vpop.f32.mrf.mxu0
  %528 = vdwg.mxu0
  %529 = vmatprep.subr.bf16.mxu0 0
  %530 = vmatpush1.bf16.msra.mxu0 %v402
  %531 = vmatprep.subr.bf16.mxu0 0
  %532 = vmatpush1.bf16.msra.mxu0 %v401
  %533 = vmatprep.subr.bf16.mxu0 0
  %534 = vmatpush1.bf16.msra.mxu0 %v400
  %535 = vmatprep.subr.bf16.mxu0 0
  %536 = vmatpush1.bf16.msra.mxu0 %v399
  %537 = vmatprep.subr.bf16.mxu0 0
  %538 = vmatpush1.bf16.msra.mxu0 %v398
  %539 = vmatprep.subr.bf16.mxu0 0
  %540 = vmatpush1.bf16.msra.mxu0 %v397
  %541 = vmatprep.subr.bf16.mxu0 0
  %542 = vmatpush1.bf16.msra.mxu0 %v396
  %543 = vmatprep.subr.bf16.mxu0 0
  %544 = vmatpush1.bf16.msra.mxu0 %v395
  %545 = vmatprep.subr.bf16.mxu0 0
  %546 = vmatpush2.bf16.msra.mxu0 %v410
  %547 = vmatprep.subr.bf16.mxu0 0
  %548 = vmatpush2.bf16.msra.mxu0 %v409
  %549 = vmatprep.subr.bf16.mxu0 0
  %550 = vmatpush2.bf16.msra.mxu0 %v408
  %551 = vmatprep.subr.bf16.mxu0 0
  %552 = vmatpush2.bf16.msra.mxu0 %v407
  %553 = vmatprep.subr.bf16.mxu0 0
  %554 = vmatpush2.bf16.msra.mxu0 %v406
  %555 = vmatprep.subr.bf16.mxu0 0
  %556 = vmatpush2.bf16.msra.mxu0 %v405
  %557 = vmatprep.subr.bf16.mxu0 0
  %558 = vmatpush2.bf16.msra.mxu0 %v404
  %559 = vmatprep.subr.bf16.mxu0 0
  %560 = vmatpush2.bf16.msra.mxu0 %v403
  %561 = vmatprep.mubr.bf16.mxu0 %v202
  %562 = vmatmul.mubr.bf16.gmra.mxu0 %v201
  %v563 = vpop.f32.mrf.mxu0
  %v564 = vadd.f32 %v499, %v563
  %v565 = vpop.f32.mrf.mxu0
  %v566 = vpop.f32.mrf.mxu0
  %v567 = vadd.f32 %v502, %v566
  %v568 = vpop.f32.mrf.mxu0
  %569 = vmatprep.mubr.bf16.mxu0 %v207
  %570 = vmatmul.mubr.bf16.gmra.mxu0 %v206
  %v571 = vpop.f32.mrf.mxu0
  %v572 = vadd.f32 %v507, %v571
  %v573 = vpop.f32.mrf.mxu0
  %v574 = vpop.f32.mrf.mxu0
  %v575 = vadd.f32 %v510, %v574
  %v576 = vpop.f32.mrf.mxu0
  %577 = vmatprep.mubr.bf16.mxu0 %v212
  %578 = vmatmul.mubr.bf16.gmra.mxu0 %v211
  %v579 = vpop.f32.mrf.mxu0
  %v580 = vadd.f32 %v515, %v579
  %v581 = vpop.f32.mrf.mxu0
  %v582 = vpop.f32.mrf.mxu0
  %v583 = vadd.f32 %v518, %v582
  %v584 = vpop.f32.mrf.mxu0
  %585 = vmatprep.mubr.bf16.mxu0 %v217
  %586 = vmatmul.mubr.bf16.gmra.mxu0 %v216
  %v587 = vpop.f32.mrf.mxu0
  %v588 = vadd.f32 %v523, %v587
  %v589 = vpop.f32.mrf.mxu0
  %v590 = vpop.f32.mrf.mxu0
  %v591 = vadd.f32 %v526, %v590
  %v592 = vpop.f32.mrf.mxu0
  %593 = vdwg.mxu0
  %594 = vmatprep.subr.bf16.mxu0 0
  %595 = vmatpush1.bf16.msra.mxu0 0
  %596 = vmatprep.subr.bf16.mxu0 0
  %597 = vmatpush1.bf16.msra.mxu0 0
  %598 = vmatprep.subr.bf16.mxu0 0
  %599 = vmatpush1.bf16.msra.mxu0 0
  %600 = vmatprep.subr.bf16.mxu0 0
  %601 = vmatpush1.bf16.msra.mxu0 0
  %602 = vmatprep.subr.bf16.mxu0 0
  %603 = vmatpush1.bf16.msra.mxu0 %v414
  %604 = vmatprep.subr.bf16.mxu0 0
  %605 = vmatpush1.bf16.msra.mxu0 %v413
  %606 = vmatprep.subr.bf16.mxu0 0
  %607 = vmatpush1.bf16.msra.mxu0 %v412
  %608 = vmatprep.subr.bf16.mxu0 0
  %609 = vmatpush1.bf16.msra.mxu0 %v411
  %610 = vmatprep.subr.bf16.mxu0 0
  %611 = vmatpush2.bf16.msra.mxu0 0
  %612 = vmatprep.subr.bf16.mxu0 0
  %613 = vmatpush2.bf16.msra.mxu0 0
  %614 = vmatprep.subr.bf16.mxu0 0
  %615 = vmatpush2.bf16.msra.mxu0 0
  %616 = vmatprep.subr.bf16.mxu0 0
  %617 = vmatpush2.bf16.msra.mxu0 0
  %618 = vmatprep.subr.bf16.mxu0 0
  %619 = vmatpush2.bf16.msra.mxu0 0
  %620 = vmatprep.subr.bf16.mxu0 0
  %621 = vmatpush2.bf16.msra.mxu0 0
  %622 = vmatprep.subr.bf16.mxu0 0
  %623 = vmatpush2.bf16.msra.mxu0 0
  %624 = vmatprep.subr.bf16.mxu0 0
  %625 = vmatpush2.bf16.msra.mxu0 0
  %626 = vmatprep.mubr.bf16.mxu0 0
  %627 = vmatmul.mubr.bf16.gmra.mxu0 %v453
  %v628 = vpop.f32.mrf.mxu0
  %v629 = vadd.f32 %v564, %v628
  %v630 = vpop.f32.mrf.mxu0
  %v631 = vpop.f32.mrf.mxu0
  %v632 = vadd.f32 %v567, %v631
  %v633 = vpop.f32.mrf.mxu0
  %634 = vmatprep.mubr.bf16.mxu0 0
  %635 = vmatmul.mubr.bf16.gmra.mxu0 %v456
  %v636 = vpop.f32.mrf.mxu0
  %v637 = vadd.f32 %v572, %v636
  %v638 = vpop.f32.mrf.mxu0
  %v639 = vpop.f32.mrf.mxu0
  %v640 = vadd.f32 %v575, %v639
  %v641 = vpop.f32.mrf.mxu0
  %642 = vmatprep.mubr.bf16.mxu0 0
  %643 = vmatmul.mubr.bf16.gmra.mxu0 %v459
  %v644 = vpop.f32.mrf.mxu0
  %v645 = vadd.f32 %v580, %v644
  %v646 = vpop.f32.mrf.mxu0
  %v647 = vpop.f32.mrf.mxu0
  %v648 = vadd.f32 %v583, %v647
  %v649 = vpop.f32.mrf.mxu0
  %650 = vmatprep.mubr.bf16.mxu0 0
  %651 = vmatmul.mubr.bf16.gmra.mxu0 %v462
  %v652 = vpop.f32.mrf.mxu0
  %v653 = vadd.f32 %v588, %v652
  %v654 = vpop.f32.mrf.mxu0
  %v655 = vpop.f32.mrf.mxu0
  %v656 = vadd.f32 %v591, %v655
  %v657 = vpop.f32.mrf.mxu0
  %658 = vdwg.mxu0
  %v659 = vmax.f32 %v629, %v637
  %v660 = vmax.f32 %v632, %v640
  %v661 = vmax.f32 %v645, %v653
  %v662 = vmax.f32 %v648, %v656
  %v663 = vmax.f32 %v659, %v661
  %v664 = vmax.f32 %v660, %v662
  %v665 = vld [vmem:[%s2] sm:$0x1]
  %v667 = vlaneseq
  %v668 = vshrl.u32 %v667, 7
  %v669 = vsub.s32 0, %v668
  %v670 = vrot.slane %v665, %v669
  %v672 = vadd.f32 %v663, %v670
  %v673 = vadd.f32 %v664, %v670
  %v674 = vmax.f32 %v672, 0.0
  %v675 = vmax.f32 %v673, 0.0
  %v676 = vpack.c.bf16 %v674, %v674
  %v677 = vld [vmem:[%s3] sm:$0xf]
  %v678 = vld [vmem:[%s3 + $0x4] sm:$0xf]
  %v679 = vld [vmem:[%s3 + $0x8] sm:$0xf]
  %v680 = vld [vmem:[%s3 + $0xc] sm:$0xf]
  %v681 = vld [vmem:[%s3 + $0x10] sm:$0xf]
  %v682 = vld [vmem:[%s3 + $0x14] sm:$0xf]
  %v683 = vld [vmem:[%s3 + $0x18] sm:$0xf]
  %v684 = vld [vmem:[%s3 + $0x1c] sm:$0xf]
  %v685 = vld [vmem:[%s3 + $0x20] sm:$0xf]
  %v686 = vld [vmem:[%s3 + $0x24] sm:$0xf]
  %v687 = vld [vmem:[%s3 + $0x28] sm:$0xf]
  %v688 = vld [vmem:[%s3 + $0x2c] sm:$0xf]
  %v689 = vld [vmem:[%s3 + $0x30] sm:$0xf]
  %v690 = vld [vmem:[%s3 + $0x34] sm:$0xf]
  %v691 = vld [vmem:[%s3 + $0x38] sm:$0xf]
  %v692 = vld [vmem:[%s3 + $0x3c] sm:$0xf]
  %v693 = vld [vmem:[%s3 + $0x40] sm:$0xf]
  %v694 = vld [vmem:[%s3 + $0x44] sm:$0xf]
  %v695 = vld [vmem:[%s3 + $0x48] sm:$0xf]
  %v696 = vld [vmem:[%s3 + $0x4c] sm:$0xf]
  %v697 = vld [vmem:[%s3 + $0x50] sm:$0xf]
  %v698 = vld [vmem:[%s3 + $0x54] sm:$0xf]
  %v699 = vld [vmem:[%s3 + $0x58] sm:$0xf]
  %v700 = vld [vmem:[%s3 + $0x5c] sm:$0xf]
  %v701 = vld [vmem:[%s3 + $0x60] sm:$0xf]
  %v702 = vld [vmem:[%s3 + $0x64] sm:$0xf]
  %v703 = vld [vmem:[%s3 + $0x68] sm:$0xf]
  %v704 = vld [vmem:[%s3 + $0x6c] sm:$0xf]
  %v705 = vld [vmem:[%s3 + $0x70] sm:$0xf]
  %v706 = vld [vmem:[%s3 + $0x74] sm:$0xf]
  %v707 = vld [vmem:[%s3 + $0x78] sm:$0xf]
  %v708 = vld [vmem:[%s3 + $0x7c] sm:$0xf]
  %v710 = vrot.slane %v676, 2
  %v728 = vunpack.c.l.b16 %v693
  %v729 = vunpack.c.l.b16 %v694
  %v730 = vunpack.c.l.b16 %v695
  %v731 = vunpack.c.l.b16 %v696
  %v732 = vunpack.c.l.b16 %v697
  %v733 = vunpack.c.l.b16 %v698
  %v734 = vunpack.c.l.b16 %v699
  %v735 = vunpack.c.l.b16 %v700
  %v736 = vunpack.c.l.b16 %v701
  %v737 = vunpack.c.l.b16 %v702
  %v738 = vunpack.c.l.b16 %v703
  %v739 = vunpack.c.l.b16 %v704
  %v740 = vunpack.c.l.b16 %v705
  %v741 = vunpack.c.l.b16 %v706
  %v742 = vunpack.c.l.b16 %v707
  %v743 = vunpack.c.l.b16 %v708
  %v744 = vpack.c.b16 %v729, %v728
  %v745 = vpack.c.b16 %v731, %v730
  %v746 = vpack.c.b16 %v733, %v732
  %v747 = vpack.c.b16 %v735, %v734
  %v748 = vpack.c.b16 %v737, %v736
  %v749 = vpack.c.b16 %v739, %v738
  %v750 = vpack.c.b16 %v741, %v740
  %v751 = vpack.c.b16 %v743, %v742
  %760 = vmatprep.subr.bf16.mxu0 0
  %761 = vmatpush1.bf16.msra.mxu0 %v751
  %762 = vmatprep.subr.bf16.mxu0 0
  %763 = vmatpush1.bf16.msra.mxu0 %v750
  %764 = vmatprep.subr.bf16.mxu0 0
  %765 = vmatpush1.bf16.msra.mxu0 %v749
  %766 = vmatprep.subr.bf16.mxu0 0
  %767 = vmatpush1.bf16.msra.mxu0 %v748
  %768 = vmatprep.subr.bf16.mxu0 0
  %769 = vmatpush1.bf16.msra.mxu0 %v747
  %770 = vmatprep.subr.bf16.mxu0 0
  %771 = vmatpush1.bf16.msra.mxu0 %v746
  %772 = vmatprep.subr.bf16.mxu0 0
  %773 = vmatpush1.bf16.msra.mxu0 %v745
  %774 = vmatprep.subr.bf16.mxu0 0
  %775 = vmatpush1.bf16.msra.mxu0 %v744
  %776 = vmatprep.subr.bf16.mxu0 0
  %777 = vmatpush2.bf16.msra.mxu0 0
  %778 = vmatprep.subr.bf16.mxu0 0
  %779 = vmatpush2.bf16.msra.mxu0 0
  %780 = vmatprep.subr.bf16.mxu0 0
  %781 = vmatpush2.bf16.msra.mxu0 0
  %782 = vmatprep.subr.bf16.mxu0 0
  %783 = vmatpush2.bf16.msra.mxu0 0
  %784 = vmatprep.subr.bf16.mxu0 0
  %785 = vmatpush2.bf16.msra.mxu0 0
  %786 = vmatprep.subr.bf16.mxu0 0
  %787 = vmatpush2.bf16.msra.mxu0 0
  %788 = vmatprep.subr.bf16.mxu0 0
  %789 = vmatpush2.bf16.msra.mxu0 0
  %790 = vmatprep.subr.bf16.mxu0 0
  %791 = vmatpush2.bf16.msra.mxu0 0
  %792 = vmatprep.mubr.bf16.mxu0 0
  %793 = vmatmul.mubr.bf16.gmra.mxu0 %v710
  %v794 = vpop.f32.mrf.mxu0
  %v795 = vadd.f32 0.0, %v794
  %v796 = vpop.f32.mrf.mxu0
  %v797 = vpop.f32.mrf.mxu0
  %v798 = vpop.f32.mrf.mxu0
  %799 = vdwg.mxu0
  %v816 = vunpack.c.l.b16 %v677
  %v817 = vunpack.c.l.b16 %v678
  %v818 = vunpack.c.l.b16 %v679
  %v819 = vunpack.c.l.b16 %v680
  %v820 = vunpack.c.l.b16 %v681
  %v821 = vunpack.c.l.b16 %v682
  %v822 = vunpack.c.l.b16 %v683
  %v823 = vunpack.c.l.b16 %v684
  %v824 = vunpack.c.l.b16 %v685
  %v825 = vunpack.c.l.b16 %v686
  %v826 = vunpack.c.l.b16 %v687
  %v827 = vunpack.c.l.b16 %v688
  %v828 = vunpack.c.l.b16 %v689
  %v829 = vunpack.c.l.b16 %v690
  %v830 = vunpack.c.l.b16 %v691
  %v831 = vunpack.c.l.b16 %v692
  %v832 = vpack.c.b16 %v817, %v816
  %v833 = vpack.c.b16 %v819, %v818
  %v834 = vpack.c.b16 %v821, %v820
  %v835 = vpack.c.b16 %v823, %v822
  %v836 = vpack.c.b16 %v825, %v824
  %v837 = vpack.c.b16 %v827, %v826
  %v838 = vpack.c.b16 %v829, %v828
  %v839 = vpack.c.b16 %v831, %v830
  %848 = vmatprep.subr.bf16.mxu0 0
  %849 = vmatpush1.bf16.msra.mxu0 %v839
  %850 = vmatprep.subr.bf16.mxu0 0
  %851 = vmatpush1.bf16.msra.mxu0 %v838
  %852 = vmatprep.subr.bf16.mxu0 0
  %853 = vmatpush1.bf16.msra.mxu0 %v837
  %854 = vmatprep.subr.bf16.mxu0 0
  %855 = vmatpush1.bf16.msra.mxu0 %v836
  %856 = vmatprep.subr.bf16.mxu0 0
  %857 = vmatpush1.bf16.msra.mxu0 %v835
  %858 = vmatprep.subr.bf16.mxu0 0
  %859 = vmatpush1.bf16.msra.mxu0 %v834
  %860 = vmatprep.subr.bf16.mxu0 0
  %861 = vmatpush1.bf16.msra.mxu0 %v833
  %862 = vmatprep.subr.bf16.mxu0 0
  %863 = vmatpush1.bf16.msra.mxu0 %v832
  %864 = vmatprep.subr.bf16.mxu0 0
  %865 = vmatpush2.bf16.msra.mxu0 0
  %866 = vmatprep.subr.bf16.mxu0 0
  %867 = vmatpush2.bf16.msra.mxu0 0
  %868 = vmatprep.subr.bf16.mxu0 0
  %869 = vmatpush2.bf16.msra.mxu0 0
  %870 = vmatprep.subr.bf16.mxu0 0
  %871 = vmatpush2.bf16.msra.mxu0 0
  %872 = vmatprep.subr.bf16.mxu0 0
  %873 = vmatpush2.bf16.msra.mxu0 0
  %874 = vmatprep.subr.bf16.mxu0 0
  %875 = vmatpush2.bf16.msra.mxu0 0
  %876 = vmatprep.subr.bf16.mxu0 0
  %877 = vmatpush2.bf16.msra.mxu0 0
  %878 = vmatprep.subr.bf16.mxu0 0
  %879 = vmatpush2.bf16.msra.mxu0 0
  %880 = vmatprep.mubr.bf16.mxu0 0
  %881 = vmatmul.mubr.bf16.gmra.mxu0 %v676
  %v882 = vpop.f32.mrf.mxu0
  %v883 = vadd.f32 %v795, %v882
  %v884 = vpop.f32.mrf.mxu0
  %v885 = vpop.f32.mrf.mxu0
  %v886 = vpop.f32.mrf.mxu0
  %887 = vdwg.mxu0
  %v888 = vpack.c.bf16 %v675, %v675
  %v889 = vld [vmem:[%s3 + $0x80] sm:$0xf]
  %v890 = vld [vmem:[%s3 + $0x84] sm:$0xf]
  %v891 = vld [vmem:[%s3 + $0x88] sm:$0xf]
  %v892 = vld [vmem:[%s3 + $0x8c] sm:$0xf]
  %v893 = vld [vmem:[%s3 + $0x90] sm:$0xf]
  %v894 = vld [vmem:[%s3 + $0x94] sm:$0xf]
  %v895 = vld [vmem:[%s3 + $0x98] sm:$0xf]
  %v896 = vld [vmem:[%s3 + $0x9c] sm:$0xf]
  %v897 = vld [vmem:[%s3 + $0xa0] sm:$0xf]
  %v898 = vld [vmem:[%s3 + $0xa4] sm:$0xf]
  %v899 = vld [vmem:[%s3 + $0xa8] sm:$0xf]
  %v900 = vld [vmem:[%s3 + $0xac] sm:$0xf]
  %v901 = vld [vmem:[%s3 + $0xb0] sm:$0xf]
  %v902 = vld [vmem:[%s3 + $0xb4] sm:$0xf]
  %v903 = vld [vmem:[%s3 + $0xb8] sm:$0xf]
  %v904 = vld [vmem:[%s3 + $0xbc] sm:$0xf]
  %v921 = vunpack.c.l.b16 %v889
  %v922 = vunpack.c.l.b16 %v890
  %v923 = vunpack.c.l.b16 %v891
  %v924 = vunpack.c.l.b16 %v892
  %v925 = vunpack.c.l.b16 %v893
  %v926 = vunpack.c.l.b16 %v894
  %v927 = vunpack.c.l.b16 %v895
  %v928 = vunpack.c.l.b16 %v896
  %v929 = vunpack.c.l.b16 %v897
  %v930 = vunpack.c.l.b16 %v898
  %v931 = vunpack.c.l.b16 %v899
  %v932 = vunpack.c.l.b16 %v900
  %v933 = vunpack.c.l.b16 %v901
  %v934 = vunpack.c.l.b16 %v902
  %v935 = vunpack.c.l.b16 %v903
  %v936 = vunpack.c.l.b16 %v904
  %v937 = vpack.c.b16 %v922, %v921
  %v938 = vpack.c.b16 %v924, %v923
  %v939 = vpack.c.b16 %v926, %v925
  %v940 = vpack.c.b16 %v928, %v927
  %v941 = vpack.c.b16 %v930, %v929
  %v942 = vpack.c.b16 %v932, %v931
  %v943 = vpack.c.b16 %v934, %v933
  %v944 = vpack.c.b16 %v936, %v935
  %953 = vmatprep.subr.bf16.mxu0 0
  %954 = vmatpush1.bf16.msra.mxu0 %v944
  %955 = vmatprep.subr.bf16.mxu0 0
  %956 = vmatpush1.bf16.msra.mxu0 %v943
  %957 = vmatprep.subr.bf16.mxu0 0
  %958 = vmatpush1.bf16.msra.mxu0 %v942
  %959 = vmatprep.subr.bf16.mxu0 0
  %960 = vmatpush1.bf16.msra.mxu0 %v941
  %961 = vmatprep.subr.bf16.mxu0 0
  %962 = vmatpush1.bf16.msra.mxu0 %v940
  %963 = vmatprep.subr.bf16.mxu0 0
  %964 = vmatpush1.bf16.msra.mxu0 %v939
  %965 = vmatprep.subr.bf16.mxu0 0
  %966 = vmatpush1.bf16.msra.mxu0 %v938
  %967 = vmatprep.subr.bf16.mxu0 0
  %968 = vmatpush1.bf16.msra.mxu0 %v937
  %969 = vmatprep.subr.bf16.mxu0 0
  %970 = vmatpush2.bf16.msra.mxu0 0
  %971 = vmatprep.subr.bf16.mxu0 0
  %972 = vmatpush2.bf16.msra.mxu0 0
  %973 = vmatprep.subr.bf16.mxu0 0
  %974 = vmatpush2.bf16.msra.mxu0 0
  %975 = vmatprep.subr.bf16.mxu0 0
  %976 = vmatpush2.bf16.msra.mxu0 0
  %977 = vmatprep.subr.bf16.mxu0 0
  %978 = vmatpush2.bf16.msra.mxu0 0
  %979 = vmatprep.subr.bf16.mxu0 0
  %980 = vmatpush2.bf16.msra.mxu0 0
  %981 = vmatprep.subr.bf16.mxu0 0
  %982 = vmatpush2.bf16.msra.mxu0 0
  %983 = vmatprep.subr.bf16.mxu0 0
  %984 = vmatpush2.bf16.msra.mxu0 0
  %985 = vmatprep.mubr.bf16.mxu0 0
  %986 = vmatmul.mubr.bf16.gmra.mxu0 %v888
  %v987 = vpop.f32.mrf.mxu0
  %v988 = vadd.f32 0.0, %v987
  %v989 = vpop.f32.mrf.mxu0
  %v990 = vpop.f32.mrf.mxu0
  %v991 = vpop.f32.mrf.mxu0
  %992 = vdwg.mxu0
  %v993 = vadd.f32 %v883, %v988
  %v994 = vld [vmem:[%s3 + $0xc0] sm:$0xf]
  %v995 = vld [vmem:[%s3 + $0xc4] sm:$0xf]
  %v996 = vld [vmem:[%s3 + $0xc8] sm:$0xf]
  %v997 = vld [vmem:[%s3 + $0xcc] sm:$0xf]
  %v998 = vld [vmem:[%s3 + $0xd0] sm:$0xf]
  %v999 = vld [vmem:[%s3 + $0xd4] sm:$0xf]
  %v1000 = vld [vmem:[%s3 + $0xd8] sm:$0xf]
  %v1001 = vld [vmem:[%s3 + $0xdc] sm:$0xf]
  %v1002 = vld [vmem:[%s3 + $0xe0] sm:$0xf]
  %v1003 = vld [vmem:[%s3 + $0xe4] sm:$0xf]
  %v1004 = vld [vmem:[%s3 + $0xe8] sm:$0xf]
  %v1005 = vld [vmem:[%s3 + $0xec] sm:$0xf]
  %v1006 = vld [vmem:[%s3 + $0xf0] sm:$0xf]
  %v1007 = vld [vmem:[%s3 + $0xf4] sm:$0xf]
  %v1008 = vld [vmem:[%s3 + $0xf8] sm:$0xf]
  %v1009 = vld [vmem:[%s3 + $0xfc] sm:$0xf]
  %v1011 = vrot.slane %v888, 2
  %v1029 = vunpack.c.l.b16 %v994
  %v1030 = vunpack.c.l.b16 %v995
  %v1031 = vunpack.c.l.b16 %v996
  %v1032 = vunpack.c.l.b16 %v997
  %v1033 = vunpack.c.l.b16 %v998
  %v1034 = vunpack.c.l.b16 %v999
  %v1035 = vunpack.c.l.b16 %v1000
  %v1036 = vunpack.c.l.b16 %v1001
  %v1037 = vunpack.c.l.b16 %v1002
  %v1038 = vunpack.c.l.b16 %v1003
  %v1039 = vunpack.c.l.b16 %v1004
  %v1040 = vunpack.c.l.b16 %v1005
  %v1041 = vunpack.c.l.b16 %v1006
  %v1042 = vunpack.c.l.b16 %v1007
  %v1043 = vunpack.c.l.b16 %v1008
  %v1044 = vunpack.c.l.b16 %v1009
  %v1045 = vpack.c.b16 %v1030, %v1029
  %v1046 = vpack.c.b16 %v1032, %v1031
  %v1047 = vpack.c.b16 %v1034, %v1033
  %v1048 = vpack.c.b16 %v1036, %v1035
  %v1049 = vpack.c.b16 %v1038, %v1037
  %v1050 = vpack.c.b16 %v1040, %v1039
  %v1051 = vpack.c.b16 %v1042, %v1041
  %v1052 = vpack.c.b16 %v1044, %v1043
  %1061 = vmatprep.subr.bf16.mxu0 0
  %1062 = vmatpush1.bf16.msra.mxu0 %v1052
  %1063 = vmatprep.subr.bf16.mxu0 0
  %1064 = vmatpush1.bf16.msra.mxu0 %v1051
  %1065 = vmatprep.subr.bf16.mxu0 0
  %1066 = vmatpush1.bf16.msra.mxu0 %v1050
  %1067 = vmatprep.subr.bf16.mxu0 0
  %1068 = vmatpush1.bf16.msra.mxu0 %v1049
  %1069 = vmatprep.subr.bf16.mxu0 0
  %1070 = vmatpush1.bf16.msra.mxu0 %v1048
  %1071 = vmatprep.subr.bf16.mxu0 0
  %1072 = vmatpush1.bf16.msra.mxu0 %v1047
  %1073 = vmatprep.subr.bf16.mxu0 0
  %1074 = vmatpush1.bf16.msra.mxu0 %v1046
  %1075 = vmatprep.subr.bf16.mxu0 0
  %1076 = vmatpush1.bf16.msra.mxu0 %v1045
  %1077 = vmatprep.subr.bf16.mxu0 0
  %1078 = vmatpush2.bf16.msra.mxu0 0
  %1079 = vmatprep.subr.bf16.mxu0 0
  %1080 = vmatpush2.bf16.msra.mxu0 0
  %1081 = vmatprep.subr.bf16.mxu0 0
  %1082 = vmatpush2.bf16.msra.mxu0 0
  %1083 = vmatprep.subr.bf16.mxu0 0
  %1084 = vmatpush2.bf16.msra.mxu0 0
  %1085 = vmatprep.subr.bf16.mxu0 0
  %1086 = vmatpush2.bf16.msra.mxu0 0
  %1087 = vmatprep.subr.bf16.mxu0 0
  %1088 = vmatpush2.bf16.msra.mxu0 0
  %1089 = vmatprep.subr.bf16.mxu0 0
  %1090 = vmatpush2.bf16.msra.mxu0 0
  %1091 = vmatprep.subr.bf16.mxu0 0
  %1092 = vmatpush2.bf16.msra.mxu0 0
  %1093 = vmatprep.mubr.bf16.mxu0 0
  %1094 = vmatmul.mubr.bf16.gmra.mxu0 %v1011
  %v1095 = vpop.f32.mrf.mxu0
  %v1096 = vadd.f32 0.0, %v1095
  %v1097 = vpop.f32.mrf.mxu0
  %v1098 = vpop.f32.mrf.mxu0
  %v1099 = vpop.f32.mrf.mxu0
  %1100 = vdwg.mxu0
  %v1101 = vadd.f32 %v993, %v1096
  %v1102 = vld [vmem:[%s4] sm:$0x1]
  %v1104 = vlaneseq
  %v1105 = vshrl.u32 %v1104, 7
  %v1106 = vsub.s32 0, %v1105
  %v1107 = vrot.slane %v1102, %v1106
  %v1109 = vadd.f32 %v1101, %v1107
  %v1110 = vmax.f32 %v1109, 0.0
  %v1111 = vpack.c.bf16 %v1110, %v1110
  %v1112 = vld [vmem:[%s5] sm:$0xf]
  %v1113 = vld [vmem:[%s5 + $0x4] sm:$0xf]
  %v1114 = vld [vmem:[%s5 + $0x8] sm:$0xf]
  %v1115 = vld [vmem:[%s5 + $0xc] sm:$0xf]
  %v1116 = vld [vmem:[%s5 + $0x10] sm:$0xf]
  %v1117 = vld [vmem:[%s5 + $0x14] sm:$0xf]
  %v1118 = vld [vmem:[%s5 + $0x18] sm:$0xf]
  %v1119 = vld [vmem:[%s5 + $0x1c] sm:$0xf]
  %v1120 = vld [vmem:[%s5 + $0x20] sm:$0xf]
  %v1121 = vld [vmem:[%s5 + $0x24] sm:$0xf]
  %v1122 = vld [vmem:[%s5 + $0x28] sm:$0xf]
  %v1123 = vld [vmem:[%s5 + $0x2c] sm:$0xf]
  %v1124 = vld [vmem:[%s5 + $0x30] sm:$0xf]
  %v1125 = vld [vmem:[%s5 + $0x34] sm:$0xf]
  %v1126 = vld [vmem:[%s5 + $0x38] sm:$0xf]
  %v1127 = vld [vmem:[%s5 + $0x3c] sm:$0xf]
  %v1128 = vld [vmem:[%s6] sm:$0x1]
  %v1130 = vlaneseq
  %v1131 = vshrl.u32 %v1130, 7
  %v1132 = vsub.s32 0, %v1131
  %v1133 = vrot.slane %v1128, %v1132
  %v1151 = vunpack.c.l.b16 %v1112
  %v1152 = vunpack.c.l.b16 %v1113
  %v1153 = vunpack.c.l.b16 %v1114
  %v1154 = vunpack.c.l.b16 %v1115
  %v1155 = vunpack.c.l.b16 %v1116
  %v1156 = vunpack.c.l.b16 %v1117
  %v1157 = vunpack.c.l.b16 %v1118
  %v1158 = vunpack.c.l.b16 %v1119
  %v1159 = vunpack.c.l.b16 %v1120
  %v1160 = vunpack.c.l.b16 %v1121
  %v1161 = vunpack.c.l.b16 %v1122
  %v1162 = vunpack.c.l.b16 %v1123
  %v1163 = vunpack.c.l.b16 %v1124
  %v1164 = vunpack.c.l.b16 %v1125
  %v1165 = vunpack.c.l.b16 %v1126
  %v1166 = vunpack.c.l.b16 %v1127
  %v1167 = vpack.c.b16 %v1152, %v1151
  %v1168 = vpack.c.b16 %v1154, %v1153
  %v1169 = vpack.c.b16 %v1156, %v1155
  %v1170 = vpack.c.b16 %v1158, %v1157
  %v1171 = vpack.c.b16 %v1160, %v1159
  %v1172 = vpack.c.b16 %v1162, %v1161
  %v1173 = vpack.c.b16 %v1164, %v1163
  %v1174 = vpack.c.b16 %v1166, %v1165
  %1183 = vmatprep.subr.bf16.mxu0 0
  %1184 = vmatpush1.bf16.msra.mxu0 %v1174
  %1185 = vmatprep.subr.bf16.mxu0 0
  %1186 = vmatpush1.bf16.msra.mxu0 %v1173
  %1187 = vmatprep.subr.bf16.mxu0 0
  %1188 = vmatpush1.bf16.msra.mxu0 %v1172
  %1189 = vmatprep.subr.bf16.mxu0 0
  %1190 = vmatpush1.bf16.msra.mxu0 %v1171
  %1191 = vmatprep.subr.bf16.mxu0 0
  %1192 = vmatpush1.bf16.msra.mxu0 %v1170
  %1193 = vmatprep.subr.bf16.mxu0 0
  %1194 = vmatpush1.bf16.msra.mxu0 %v1169
  %1195 = vmatprep.subr.bf16.mxu0 0
  %1196 = vmatpush1.bf16.msra.mxu0 %v1168
  %1197 = vmatprep.subr.bf16.mxu0 0
  %1198 = vmatpush1.bf16.msra.mxu0 %v1167
  %1199 = vmatprep.subr.bf16.mxu0 0
  %1200 = vmatpush2.bf16.msra.mxu0 0
  %1201 = vmatprep.subr.bf16.mxu0 0
  %1202 = vmatpush2.bf16.msra.mxu0 0
  %1203 = vmatprep.subr.bf16.mxu0 0
  %1204 = vmatpush2.bf16.msra.mxu0 0
  %1205 = vmatprep.subr.bf16.mxu0 0
  %1206 = vmatpush2.bf16.msra.mxu0 0
  %1207 = vmatprep.subr.bf16.mxu0 0
  %1208 = vmatpush2.bf16.msra.mxu0 0
  %1209 = vmatprep.subr.bf16.mxu0 0
  %1210 = vmatpush2.bf16.msra.mxu0 0
  %1211 = vmatprep.subr.bf16.mxu0 0
  %1212 = vmatpush2.bf16.msra.mxu0 0
  %1213 = vmatprep.subr.bf16.mxu0 0
  %1214 = vmatpush2.bf16.msra.mxu0 0
  %1215 = vmatprep.mubr.bf16.mxu0 0
  %1216 = vmatmul.mubr.bf16.gmra.mxu0 %v1111
  %v1217 = vpop.f32.mrf.mxu0
  %v1218 = vadd.f32 %v1133, %v1217
  %v1219 = vpop.f32.mrf.mxu0
  %v1220 = vpop.f32.mrf.mxu0
  %v1221 = vpop.f32.mrf.mxu0
  %1222 = vdwg.mxu0
  %v1223 = vmax.f32 %v1218, 0.0
  %v1224 = vpack.c.bf16 %v1223, %v1223
  %v1225 = vld [vmem:[%s7] sm:$0xf]
  %v1226 = vld [vmem:[%s7 + $0x4] sm:$0xf]
  %v1227 = vld [vmem:[%s7 + $0x8] sm:$0xf]
  %v1228 = vld [vmem:[%s7 + $0xc] sm:$0xf]
  %v1229 = vld [vmem:[%s7 + $0x10] sm:$0xf]
  %v1230 = vld [vmem:[%s7 + $0x14] sm:$0xf]
  %v1231 = vld [vmem:[%s7 + $0x18] sm:$0xf]
  %v1232 = vld [vmem:[%s7 + $0x1c] sm:$0xf]
  %v1233 = vld [vmem:[%s7 + $0x20] sm:$0xf]
  %v1234 = vld [vmem:[%s7 + $0x24] sm:$0xf]
  %v1235 = vld [vmem:[%s7 + $0x28] sm:$0xf]
  %v1236 = vld [vmem:[%s7 + $0x2c] sm:$0xf]
  %v1237 = vld [vmem:[%s7 + $0x30] sm:$0xf]
  %v1238 = vld [vmem:[%s7 + $0x34] sm:$0xf]
  %v1239 = vld [vmem:[%s7 + $0x38] sm:$0xf]
  %v1240 = vld [vmem:[%s7 + $0x3c] sm:$0xf]
  %v1241 = vld [vmem:[%s8] sm:$0x1]
  %v1243 = vlaneseq
  %v1244 = vshrl.u32 %v1243, 7
  %v1245 = vsub.s32 0, %v1244
  %v1246 = vrot.slane %v1241, %v1245
  %v1264 = vunpack.c.l.b16 %v1225
  %v1265 = vunpack.c.l.b16 %v1226
  %v1266 = vunpack.c.l.b16 %v1227
  %v1267 = vunpack.c.l.b16 %v1228
  %v1268 = vunpack.c.l.b16 %v1229
  %v1269 = vunpack.c.l.b16 %v1230
  %v1270 = vunpack.c.l.b16 %v1231
  %v1271 = vunpack.c.l.b16 %v1232
  %v1272 = vunpack.c.l.b16 %v1233
  %v1273 = vunpack.c.l.b16 %v1234
  %v1274 = vunpack.c.l.b16 %v1235
  %v1275 = vunpack.c.l.b16 %v1236
  %v1276 = vunpack.c.l.b16 %v1237
  %v1277 = vunpack.c.l.b16 %v1238
  %v1278 = vunpack.c.l.b16 %v1239
  %v1279 = vunpack.c.l.b16 %v1240
  %v1280 = vpack.c.b16 %v1265, %v1264
  %v1281 = vpack.c.b16 %v1267, %v1266
  %v1282 = vpack.c.b16 %v1269, %v1268
  %v1283 = vpack.c.b16 %v1271, %v1270
  %v1284 = vpack.c.b16 %v1273, %v1272
  %v1285 = vpack.c.b16 %v1275, %v1274
  %v1286 = vpack.c.b16 %v1277, %v1276
  %v1287 = vpack.c.b16 %v1279, %v1278
  %1296 = vmatprep.subr.bf16.mxu0 0
  %1297 = vmatpush1.bf16.msra.mxu0 %v1287
  %1298 = vmatprep.subr.bf16.mxu0 0
  %1299 = vmatpush1.bf16.msra.mxu0 %v1286
  %1300 = vmatprep.subr.bf16.mxu0 0
  %1301 = vmatpush1.bf16.msra.mxu0 %v1285
  %1302 = vmatprep.subr.bf16.mxu0 0
  %1303 = vmatpush1.bf16.msra.mxu0 %v1284
  %1304 = vmatprep.subr.bf16.mxu0 0
  %1305 = vmatpush1.bf16.msra.mxu0 %v1283
  %1306 = vmatprep.subr.bf16.mxu0 0
  %1307 = vmatpush1.bf16.msra.mxu0 %v1282
  %1308 = vmatprep.subr.bf16.mxu0 0
  %1309 = vmatpush1.bf16.msra.mxu0 %v1281
  %1310 = vmatprep.subr.bf16.mxu0 0
  %1311 = vmatpush1.bf16.msra.mxu0 %v1280
  %1312 = vmatprep.subr.bf16.mxu0 0
  %1313 = vmatpush2.bf16.msra.mxu0 0
  %1314 = vmatprep.subr.bf16.mxu0 0
  %1315 = vmatpush2.bf16.msra.mxu0 0
  %1316 = vmatprep.subr.bf16.mxu0 0
  %1317 = vmatpush2.bf16.msra.mxu0 0
  %1318 = vmatprep.subr.bf16.mxu0 0
  %1319 = vmatpush2.bf16.msra.mxu0 0
  %1320 = vmatprep.subr.bf16.mxu0 0
  %1321 = vmatpush2.bf16.msra.mxu0 0
  %1322 = vmatprep.subr.bf16.mxu0 0
  %1323 = vmatpush2.bf16.msra.mxu0 0
  %1324 = vmatprep.subr.bf16.mxu0 0
  %1325 = vmatpush2.bf16.msra.mxu0 0
  %1326 = vmatprep.subr.bf16.mxu0 0
  %1327 = vmatpush2.bf16.msra.mxu0 0
  %1328 = vmatprep.mubr.bf16.mxu0 0
  %1329 = vmatmul.mubr.bf16.gmra.mxu0 %v1224
  %v1330 = vpop.f32.mrf.mxu0
  %v1331 = vadd.f32 %v1246, %v1330
  %v1332 = vpop.f32.mrf.mxu0
  %v1333 = vpop.f32.mrf.mxu0
  %v1334 = vpop.f32.mrf.mxu0
  %1335 = vdwg.mxu0
  %v1336 = vmax.f32 %v1331, 0.0
  %v1337 = vpack.c.bf16 %v1336, %v1336
  %v1338 = vld [vmem:[%s9] sm:$0xf]
  %v1339 = vld [vmem:[%s9 + $0x4] sm:$0xf]
  %v1340 = vld [vmem:[%s9 + $0x8] sm:$0xf]
  %v1341 = vld [vmem:[%s9 + $0xc] sm:$0xf]
  %v1342 = vld [vmem:[%s9 + $0x10] sm:$0xf]
  %v1343 = vld [vmem:[%s9 + $0x14] sm:$0xf]
  %v1344 = vld [vmem:[%s9 + $0x18] sm:$0xf]
  %v1345 = vld [vmem:[%s9 + $0x1c] sm:$0xf]
  %v1346 = vld [vmem:[%s9 + $0x20] sm:$0xf]
  %v1347 = vld [vmem:[%s9 + $0x24] sm:$0xf]
  %v1348 = vld [vmem:[%s9 + $0x28] sm:$0xf]
  %v1349 = vld [vmem:[%s9 + $0x2c] sm:$0xf]
  %v1350 = vld [vmem:[%s9 + $0x30] sm:$0xf]
  %v1351 = vld [vmem:[%s9 + $0x34] sm:$0xf]
  %v1352 = vld [vmem:[%s9 + $0x38] sm:$0xf]
  %v1353 = vld [vmem:[%s9 + $0x3c] sm:$0xf]
  %v1354 = vld [vmem:[%s10] sm:$0x1]
  %v1356 = vlaneseq
  %v1357 = vshrl.u32 %v1356, 7
  %v1358 = vsub.s32 0, %v1357
  %v1359 = vrot.slane %v1354, %v1358
  %v1377 = vunpack.c.l.b16 %v1338
  %v1378 = vunpack.c.l.b16 %v1339
  %v1379 = vunpack.c.l.b16 %v1340
  %v1380 = vunpack.c.l.b16 %v1341
  %v1381 = vunpack.c.l.b16 %v1342
  %v1382 = vunpack.c.l.b16 %v1343
  %v1383 = vunpack.c.l.b16 %v1344
  %v1384 = vunpack.c.l.b16 %v1345
  %v1385 = vunpack.c.l.b16 %v1346
  %v1386 = vunpack.c.l.b16 %v1347
  %v1387 = vunpack.c.l.b16 %v1348
  %v1388 = vunpack.c.l.b16 %v1349
  %v1389 = vunpack.c.l.b16 %v1350
  %v1390 = vunpack.c.l.b16 %v1351
  %v1391 = vunpack.c.l.b16 %v1352
  %v1392 = vunpack.c.l.b16 %v1353
  %v1393 = vpack.c.b16 %v1378, %v1377
  %v1394 = vpack.c.b16 %v1380, %v1379
  %v1395 = vpack.c.b16 %v1382, %v1381
  %v1396 = vpack.c.b16 %v1384, %v1383
  %v1397 = vpack.c.b16 %v1386, %v1385
  %v1398 = vpack.c.b16 %v1388, %v1387
  %v1399 = vpack.c.b16 %v1390, %v1389
  %v1400 = vpack.c.b16 %v1392, %v1391
  %1409 = vmatprep.subr.bf16.mxu0 0
  %1410 = vmatpush1.bf16.msra.mxu0 %v1400
  %1411 = vmatprep.subr.bf16.mxu0 0
  %1412 = vmatpush1.bf16.msra.mxu0 %v1399
  %1413 = vmatprep.subr.bf16.mxu0 0
  %1414 = vmatpush1.bf16.msra.mxu0 %v1398
  %1415 = vmatprep.subr.bf16.mxu0 0
  %1416 = vmatpush1.bf16.msra.mxu0 %v1397
  %1417 = vmatprep.subr.bf16.mxu0 0
  %1418 = vmatpush1.bf16.msra.mxu0 %v1396
  %1419 = vmatprep.subr.bf16.mxu0 0
  %1420 = vmatpush1.bf16.msra.mxu0 %v1395
  %1421 = vmatprep.subr.bf16.mxu0 0
  %1422 = vmatpush1.bf16.msra.mxu0 %v1394
  %1423 = vmatprep.subr.bf16.mxu0 0
  %1424 = vmatpush1.bf16.msra.mxu0 %v1393
  %1425 = vmatprep.subr.bf16.mxu0 0
  %1426 = vmatpush2.bf16.msra.mxu0 0
  %1427 = vmatprep.subr.bf16.mxu0 0
  %1428 = vmatpush2.bf16.msra.mxu0 0
  %1429 = vmatprep.subr.bf16.mxu0 0
  %1430 = vmatpush2.bf16.msra.mxu0 0
  %1431 = vmatprep.subr.bf16.mxu0 0
  %1432 = vmatpush2.bf16.msra.mxu0 0
  %1433 = vmatprep.subr.bf16.mxu0 0
  %1434 = vmatpush2.bf16.msra.mxu0 0
  %1435 = vmatprep.subr.bf16.mxu0 0
  %1436 = vmatpush2.bf16.msra.mxu0 0
  %1437 = vmatprep.subr.bf16.mxu0 0
  %1438 = vmatpush2.bf16.msra.mxu0 0
  %1439 = vmatprep.subr.bf16.mxu0 0
  %1440 = vmatpush2.bf16.msra.mxu0 0
  %1441 = vmatprep.mubr.bf16.mxu0 0
  %1442 = vmatmul.mubr.bf16.gmra.mxu0 %v1337
  %v1443 = vpop.f32.mrf.mxu0
  %v1444 = vadd.f32 %v1359, %v1443
  %v1445 = vpop.f32.mrf.mxu0
  %v1446 = vpop.f32.mrf.mxu0
  %v1447 = vpop.f32.mrf.mxu0
  %1448 = vdwg.mxu0
  %1449 = vst [vmem:[%s11] sm:$0xf] %v1110
  %1450 = vst [vmem:[%s11 + $0x4] sm:$0xf] %v1223
  %1451 = vst [vmem:[%s11 + $0x8] sm:$0xf] %v1336
  %1452 = vst [vmem:[%s11 + $0xc] sm:$0xf] %v1444
  // Predicated region
  $region46: #{deep_coral_forward.1} parent=0 // pred_check
    _
  $region47: #{deep_coral_forward.1} parent=0 // pred_check_branch
    %1454 = sbr.rel (0) target = $region49
  $region48: #{deep_coral_forward.1} parent=0 // pred_region
    _
  $region49: #{deep_coral_forward.1} parent=0 // pred_fallthru
    _
  // Predicated region
  $region50: #{deep_coral_forward.1} parent=0 // pred_check
    _
  $region51: #{deep_coral_forward.1} parent=0 // pred_check_branch
    %1456 = sbr.rel (0) target = $region53
  $region52: #{deep_coral_forward.1} parent=0 // pred_region
    _
  $region53: #{deep_coral_forward.1} parent=0 // pred_fallthru
    _

</llo_original>
